<compile_context>
chip_gen: v7x
topology: tpu7x:2x2x1
jax: 0.10.0
libtpu: 0.0.40
codegen_flags: <defaults>
</compile_context>

<pallas_src>
import jax
import jax.numpy as jnp
from jax import lax
from jax.experimental import pallas as pl
from jax.experimental.pallas import tpu as pltpu

_SENTINEL = 1.0e6  # finite sentinel; sentinel^2 ~ 2e12 << f32 max, never NaN/inf


def _round_up(x, k):
    return -(-x // k) * k


def _pick_tb(batch):
    """Batch block size: prefer an exact divisor giving an even block count."""
    if batch <= 1:
        return 1
    best = 1
    for tb in range(1, min(8, batch) + 1):
        if batch % tb == 0 and (batch // tb) % 2 == 0:
            best = tb
    return best


def _vmem_footprint(tb, tn, tm, m_pad, num_nb):
    """Bytes of VMEM, including lane/sublane padding and double buffering."""
    f32 = 4
    u_bufs = 2 * tb * tn * 128 * f32        # (tn, 2) block lane-pads 2 -> 128
    v_bufs = 2 * tb * 8 * tm * f32          # (2, tm) block sublane-pads 2 -> 8
    o_bufs = 2 * tb * 128 * f32
    umin = tb * tn * 128 * f32              # folded running-min accumulator
    vmin = tb * 8 * m_pad * f32 if num_nb > 1 else 8 * 128 * f32
    sums = 2 * 8 * 128 * f32                # usum / vsum scalars
    temps = 2 * tb * tn * tm * f32          # materialized dsq + one tile temp
    return u_bufs + v_bufs + o_bufs + umin + vmin + sums + temps


def _make_p2cp_kernel(n, m, tb, tn, tm, num_nb, num_mt, mask_rows, mask_lanes):
    lane_groups = tm // 128

    def kernel(u_ref, vt_ref, out_ref, umin_ref, vmin_ref, usum_ref, vsum_ref):
        # u_ref:   (tb, tn, 2)        current N block, resident across the M axis
        # vt_ref:  (tb, 2, tm)        current M tile (v pre-transposed in wrapper)
        # out_ref: (1, tb, 128)       per-batch scalar broadcast over 128 lanes
        # umin_ref:(tb, tn, 128)      running min of squared dists, lane-folded
        # vmin_ref:(num_mt, tb,1,tm)  per-M-tile running min across N blocks
        # usum_ref/vsum_ref: (tb, 1)  sums of sqrt-minima per batch element
        nb = pl.program_id(1)
        mj = pl.program_id(2)
        first_nb = nb == 0
        last_nb = nb == (num_nb - 1)
        first_mj = mj == 0
        last_mj = mj == (num_mt - 1)

        @pl.when(first_nb & first_mj)
        def _init_batch_block():
            usum_ref[...] = jnp.zeros_like(usum_ref)
            vsum_ref[...] = jnp.zeros_like(vsum_ref)

        # ---- hot path: squared distances for the (tn, tm) tile (VPU only) ---
        u = u_ref[...]                       # (tb, tn, 2)
        vt = vt_ref[...]                     # (tb, 2, tm)
        ux = u[:, :, 0:1]                    # (tb, tn, 1)
        uy = u[:, :, 1:2]
        vx = vt[:, 0:1, :]                   # (tb, 1, tm)
        vy = vt[:, 1:2, :]
        dx = ux - vx                         # (tb, tn, tm)
        dy = uy - vy
        dsq = dx * dx + dy * dy              # sentinel pads -> huge finite values

        # --- u2cp: fold lanes into 128-wide groups, then running VPU min -----
        folded = dsq[:, :, 0:128]
        for g in range(1, lane_groups):
            folded = jnp.minimum(folded, dsq[:, :, g * 128:(g + 1) * 128])

        @pl.when(first_mj)
        def _umin_seed():
            umin_ref[...] = folded

        @pl.when(mj > 0)
        def _umin_carry():
            umin_ref[...] = jnp.minimum(umin_ref[...], folded)

        # --- v2cp: min over this N block's rows; carry across N blocks -------
        v_tile_min = jnp.min(dsq, axis=1, keepdims=True)     # (tb, 1, tm)

        if num_nb > 1:
            @pl.when(first_nb)
            def _vmin_seed():
                vmin_ref[mj] = v_tile_min

            @pl.when((nb > 0) & jnp.logical_not(last_nb))
            def _vmin_carry():
                vmin_ref[mj] = jnp.minimum(vmin_ref[mj], v_tile_min)

        @pl.when(last_nb)
        def _v_tile_finalize():
            if num_nb > 1:
                v_min = jnp.minimum(vmin_ref[mj], v_tile_min)
            else:
                v_min = v_tile_min
            v_d = jnp.sqrt(v_min)                             # sqrt on minima only
            if mask_lanes:
                lane = lax.broadcasted_iota(jnp.int32, (1, 1, tm), 2) + mj * tm
                v_d = jnp.where(lane < m, v_d, 0.0)
            vsum_ref[...] = vsum_ref[...] + jnp.sum(v_d, axis=-1)   # (tb, 1)

        # --- finalize this N block's u2cp contribution ------------------------
        @pl.when(last_mj)
        def _u_block_finalize():
            u_min = jnp.min(umin_ref[...], axis=-1, keepdims=True)  # (tb, tn, 1)
            u_d = jnp.sqrt(u_min)
            if mask_rows:
                row = lax.broadcasted_iota(jnp.int32, (1, tn, 1), 1) + nb * tn
                u_d = jnp.where(row < n, u_d, 0.0)
            usum_ref[...] = usum_ref[...] + jnp.sum(u_d, axis=1)    # (tb, 1)

        # --- final output write -----------------------------------------------
        @pl.when(last_nb & last_mj)
        def _write_out():
            mean_p2cp = 0.5 * (usum_ref[...] * (1.0 / n)
                               + vsum_ref[...] * (1.0 / m))         # (tb, 1)
            out_ref[0] = jnp.broadcast_to(mean_p2cp, (tb, 128)).astype(
                out_ref.dtype)

    return kernel


def mean_p2cp_distance(u, v, reduction="mean", *, tn_cap=None, tm_cap=None):
    """u: (B, N, 2), v: (B, M, 2) -> reduction over batch of mean P2CP."""
    u = jnp.asarray(u, jnp.float32)
    v = jnp.asarray(v, jnp.float32)
    B, N, _ = u.shape
    _, M, _ = v.shape

    # --- generation-aware VMEM budget ----------------------------------------
    try:
        vmem_cap = int(pltpu.get_tpu_info().vmem_capacity_bytes)
    except Exception:                       # pragma: no cover - conservative default
        vmem_cap = 64 << 20
    budget = min((vmem_cap * 5) // 8, 96 << 20)   # ~40 MiB on v7x, ~80 MiB on v5e/v6e

    # --- tiling choices -------------------------------------------------------
    m_pad = _round_up(max(M, 1), 128)
    tm_max = min(2048, tm_cap) if tm_cap else 2048
    tm = 128
    while tm < tm_max and m_pad % (tm * 2) == 0:
        tm *= 2

    n8 = _round_up(max(N, 1), 8)
    tn_max = 1024 if budget > (48 << 20) else 512
    if tn_cap is not None:
        tn_max = min(tn_max, _round_up(tn_cap, 8))
    tn = min(tn_max, n8)

    tb = _pick_tb(B)

    def _num_nb(tn_):
        return _round_up(max(N, 1), tn_) // tn_

    # Shrink tiles until the padding-aware footprint fits the budget.
    while _vmem_footprint(tb, tn, tm, m_pad, _num_nb(tn)) > budget:
        if tm > 128:
            tm //= 2
        elif tn > 8:
            tn = max(8, _round_up(tn // 2, 8))
        elif tb > 1:
            tb = max(1, tb // 2)
        else:
            break

    n_pad = _round_up(max(N, 1), tn)
    num_nb = n_pad // tn
    num_mt = m_pad // tm
    b_pad = _round_up(B, tb)
    num_bb = b_pad // tb

    # --- sentinel-padded / transposed operands (glue; hot path is in-kernel) --
    u_p = jnp.pad(u, ((0, b_pad - B), (0, n_pad - N), (0, 0)),
                  constant_values=_SENTINEL)
    v_p = jnp.pad(v, ((0, b_pad - B), (0, m_pad - M), (0, 0)),
                  constant_values=_SENTINEL)
    vt = jnp.swapaxes(v_p, -1, -2)          # (b_pad, 2, m_pad), lane-dense in M

    fp = _vmem_footprint(tb, tn, tm, m_pad, num_nb)
    vmem_limit = int(min(vmem_cap - (8 << 20), max(32 << 20, fp + (8 << 20))))

    vmin_shape = (num_mt, tb, 1, tm) if num_nb > 1 else (1, 1, 1, 128)

    kernel = _make_p2cp_kernel(N, M, tb, tn, tm, num_nb, num_mt,
                               mask_rows=(n_pad != N), mask_lanes=(m_pad != M))

    out = pl.pallas_call(
        kernel,
        out_shape=jax.ShapeDtypeStruct((num_bb, tb, 128), jnp.float32),
        grid_spec=pltpu.PrefetchScalarGridSpec(
            num_scalar_prefetch=0,
            grid=(num_bb, num_nb, num_mt),
            in_specs=[
                pl.BlockSpec((tb, tn, 2), lambda b, nb, mj: (b, nb, 0)),
                pl.BlockSpec((tb, 2, tm), lambda b, nb, mj: (b, 0, mj)),
            ],
            out_specs=pl.BlockSpec((1, tb, 128), lambda b, nb, mj: (b, 0, 0)),
            scratch_shapes=[
                pltpu.VMEM((tb, tn, 128), jnp.float32),  # u2cp running min (sq, folded)
                pltpu.VMEM(vmin_shape, jnp.float32),     # v2cp running min across N blocks
                pltpu.VMEM((tb, 1), jnp.float32),        # sum sqrt(u2cp) per batch
                pltpu.VMEM((tb, 1), jnp.float32),        # sum sqrt(v2cp) per batch
            ],
        ),
        compiler_params=pltpu.CompilerParams(
            dimension_semantics=("parallel", "arbitrary", "arbitrary"),
            vmem_limit_bytes=vmem_limit,
        ),
    )(u_p, vt)

    mean_p2cp = out.reshape(b_pad, 128)[:B, 0]   # (B,)
    if reduction == "mean":
        return jnp.mean(mean_p2cp)
    if reduction == "sum":
        return jnp.sum(mean_p2cp)
    # getattr(torch, name, identity) fallback in the original -> identity
    return mean_p2cp


def _reference(u, v):
    # Pure-JAX reference matching the PyTorch forward (reduction='mean').
    dist = jnp.sqrt(jnp.sum((u[:, :, None, :] - v[:, None, :, :]) ** 2, axis=-1))
    u2cp = jnp.min(dist, axis=-1)
    v2cp = jnp.min(dist, axis=-2)
    mean_p2cp = (jnp.sum(u2cp, axis=-1) / u.shape[-2]
                 + jnp.sum(v2cp, axis=-1) / v.shape[-2]) / 2.0
    return jnp.mean(mean_p2cp)


if __name__ == "__main__":
    key = jax.random.PRNGKey(0)
    ks = jax.random.split(key, 8)

    # Case 1: original small shapes (single tile everywhere).
    u1 = jax.random.normal(ks[0], (2, 16, 2), dtype=jnp.float32)
    v1 = jax.random.normal(ks[1], (2, 8, 2), dtype=jnp.float32)
    out1 = jax.block_until_ready(mean_p2cp_distance(u1, v1, reduction="mean"))
    exp1 = _reference(u1, v1)
    assert jnp.allclose(out1, exp1, atol=1e-5, rtol=1e-5), (out1, exp1)

    # Case 2: ragged N / M exercise the sentinel padding + tiny masks.
    u2 = jax.random.normal(ks[2], (3, 13, 2), dtype=jnp.float32)
    v2 = jax.random.normal(ks[3], (3, 9, 2), dtype=jnp.float32)
    out2 = jax.block_until_ready(mean_p2cp_distance(u2, v2, reduction="mean"))
    exp2 = _reference(u2, v2)
    assert jnp.allclose(out2, exp2, atol=1e-5, rtol=1e-5), (out2, exp2)

    # Case 3: multiple N and M tiles (tile caps forced small so the cross-tile
    # running-min / running-sum paths are exercised at a small problem size).
    u3 = jax.random.normal(ks[4], (2, 300, 2), dtype=jnp.float32)
    v3 = jax.random.normal(ks[5], (2, 300, 2), dtype=jnp.float32)
    out3 = jax.block_until_ready(
        mean_p2cp_distance(u3, v3, reduction="mean", tn_cap=128, tm_cap=128))
    exp3 = _reference(u3, v3)
    assert jnp.allclose(out3, exp3, atol=1e-5, rtol=1e-5), (out3, exp3)

    # Case 4: batch blocking (tb=2) and multi-lane-group folding (tm=512).
    u4 = jax.random.normal(ks[6], (4, 40, 2), dtype=jnp.float32)
    v4 = jax.random.normal(ks[7], (4, 500, 2), dtype=jnp.float32)
    out4 = jax.block_until_ready(mean_p2cp_distance(u4, v4, reduction="mean"))
    exp4 = _reference(u4, v4)
    assert jnp.allclose(out4, exp4, atol=1e-5, rtol=1e-5), (out4, exp4)

    print("KERNEL_OK")
</pallas_src>

<mosaic_0001>
module attributes {stable_mosaic.version = 11 : i64} {
  func.func @kernel(%arg0: i32, %arg1: i32, %arg2: i32, %arg3: memref<1x16x2xf32, #tpu.memory_space<vmem>>, %arg4: memref<1x2x128xf32, #tpu.memory_space<vmem>>, %arg5: memref<1x1x128xf32, #tpu.memory_space<vmem>>, %arg6: memref<1x16x128xf32, #tpu.memory_space<vmem>>, %arg7: memref<1x1x1x128xf32, #tpu.memory_space<vmem>>, %arg8: memref<1x1xf32, #tpu.memory_space<vmem>>, %arg9: memref<1x1xf32, #tpu.memory_space<vmem>>) attributes {dimension_semantics = [#tpu.dimension_semantics<parallel>, #tpu.dimension_semantics<arbitrary>, #tpu.dimension_semantics<arbitrary>], iteration_bounds = array<i64: 2, 1, 1>, scalar_prefetch = 0 : i64, scratch_operands = 4 : i64, tpu.core_type = #tpu.core_type<tc>, window_params = [{transform_indices = @transform_0, window_bounds = array<i64: 1, 16, 2>}, {transform_indices = @transform_1, window_bounds = array<i64: 1, 2, 128>}, {transform_indices = @transform_2, window_bounds = array<i64: 1, 1, 128>}]} {
    %c0_i32 = arith.constant 0 : i32
    %0 = arith.cmpi eq, %arg1, %c0_i32 : i32
    %c0_i32_0 = arith.constant 0 : i32
    %1 = arith.cmpi eq, %arg1, %c0_i32_0 : i32
    %c0_i32_1 = arith.constant 0 : i32
    %2 = arith.cmpi eq, %arg2, %c0_i32_1 : i32
    %c0_i32_2 = arith.constant 0 : i32
    %3 = arith.cmpi eq, %arg2, %c0_i32_2 : i32
    %4 = arith.andi %0, %2 : i1
    %5 = arith.extui %4 : i1 to i32
    %c0_i32_3 = arith.constant 0 : i32
    %6 = arith.cmpi ne, %5, %c0_i32_3 : i32
    scf.if %6 {
      %cst_15 = arith.constant 0.000000e+00 : f32
      %36 = vector.broadcast %cst_15 : f32 to vector<1x1xf32>
      %c0_16 = arith.constant 0 : index
      %c0_17 = arith.constant 0 : index
      %37 = vector.load %arg8[%c0_16, %c0_17] : memref<1x1xf32, #tpu.memory_space<vmem>>, vector<1x1xf32>
      tpu.vector_store %arg8[%c0_16, %c0_17], %36 {strides = array<i32>} : memref<1x1xf32, #tpu.memory_space<vmem>>, vector<1x1xf32>,
      %cst_18 = arith.constant 0.000000e+00 : f32
      %38 = vector.broadcast %cst_18 : f32 to vector<1x1xf32>
      %c0_19 = arith.constant 0 : index
      %c0_20 = arith.constant 0 : index
      %39 = vector.load %arg9[%c0_19, %c0_20] : memref<1x1xf32, #tpu.memory_space<vmem>>, vector<1x1xf32>
      tpu.vector_store %arg9[%c0_19, %c0_20], %38 {strides = array<i32>} : memref<1x1xf32, #tpu.memory_space<vmem>>, vector<1x1xf32>,
    } else {
    }
    %c0 = arith.constant 0 : index
    %c0_4 = arith.constant 0 : index
    %c0_5 = arith.constant 0 : index
    %7 = vector.load %arg3[%c0, %c0_4, %c0_5] : memref<1x16x2xf32, #tpu.memory_space<vmem>>, vector<1x16x2xf32>
    %c0_6 = arith.constant 0 : index
    %c0_7 = arith.constant 0 : index
    %c0_8 = arith.constant 0 : index
    %8 = vector.load %arg4[%c0_6, %c0_7, %c0_8] : memref<1x2x128xf32, #tpu.memory_space<vmem>>, vector<1x2x128xf32>
    %9 = vector.extract_strided_slice %7 {offsets = [0, 0, 0], sizes = [1, 16, 1], strides = [1, 1, 1]} : vector<1x16x2xf32> to vector<1x16x1xf32>
    %10 = vector.extract_strided_slice %7 {offsets = [0, 0, 1], sizes = [1, 16, 1], strides = [1, 1, 1]} : vector<1x16x2xf32> to vector<1x16x1xf32>
    %11 = vector.extract_strided_slice %8 {offsets = [0, 0, 0], sizes = [1, 1, 128], strides = [1, 1, 1]} : vector<1x2x128xf32> to vector<1x1x128xf32>
    %12 = vector.extract_strided_slice %8 {offsets = [0, 1, 0], sizes = [1, 1, 128], strides = [1, 1, 1]} : vector<1x2x128xf32> to vector<1x1x128xf32>
    %13 = vector.broadcast %9 : vector<1x16x1xf32> to vector<1x16x128xf32>
    %14 = vector.broadcast %11 : vector<1x1x128xf32> to vector<1x16x128xf32>
    %15 = arith.subf %13, %14 : vector<1x16x128xf32>
    %16 = vector.broadcast %10 : vector<1x16x1xf32> to vector<1x16x128xf32>
    %17 = vector.broadcast %12 : vector<1x1x128xf32> to vector<1x16x128xf32>
    %18 = arith.subf %16, %17 : vector<1x16x128xf32>
    %19 = arith.mulf %15, %15 : vector<1x16x128xf32>
    %20 = arith.mulf %18, %18 : vector<1x16x128xf32>
    %21 = arith.addf %19, %20 : vector<1x16x128xf32>
    %22 = arith.extui %2 : i1 to i32
    %c0_i32_9 = arith.constant 0 : i32
    %23 = arith.cmpi ne, %22, %c0_i32_9 : i32
    scf.if %23 {
      %c0_15 = arith.constant 0 : index
      %c0_16 = arith.constant 0 : index
      %c0_17 = arith.constant 0 : index
      %36 = vector.load %arg6[%c0_15, %c0_16, %c0_17] : memref<1x16x128xf32, #tpu.memory_space<vmem>>, vector<1x16x128xf32>
      tpu.vector_store %arg6[%c0_15, %c0_16, %c0_17], %21 {strides = array<i32>} : memref<1x16x128xf32, #tpu.memory_space<vmem>>, vector<1x16x128xf32>,
    } else {
    }
    %c0_i32_10 = arith.constant 0 : i32
    %24 = arith.cmpi sgt, %arg2, %c0_i32_10 : i32
    %25 = arith.extui %24 : i1 to i32
    %c0_i32_11 = arith.constant 0 : i32
    %26 = arith.cmpi ne, %25, %c0_i32_11 : i32
    scf.if %26 {
      %c0_15 = arith.constant 0 : index
      %c0_16 = arith.constant 0 : index
      %c0_17 = arith.constant 0 : index
      %36 = vector.load %arg6[%c0_15, %c0_16, %c0_17] : memref<1x16x128xf32, #tpu.memory_space<vmem>>, vector<1x16x128xf32>
      %37 = arith.minimumf %36, %21 : vector<1x16x128xf32>
      %c0_18 = arith.constant 0 : index
      %c0_19 = arith.constant 0 : index
      %c0_20 = arith.constant 0 : index
      %38 = vector.load %arg6[%c0_18, %c0_19, %c0_20] : memref<1x16x128xf32, #tpu.memory_space<vmem>>, vector<1x16x128xf32>
      tpu.vector_store %arg6[%c0_18, %c0_19, %c0_20], %37 {strides = array<i32>} : memref<1x16x128xf32, #tpu.memory_space<vmem>>, vector<1x16x128xf32>,
    } else {
    }
    %cst = arith.constant dense<0x7F800000> : vector<1x128xf32>
    %27 = vector.multi_reduction <minimumf>, %21, %cst [1] : vector<1x16x128xf32> to vector<1x128xf32>
    %28 = vector.shape_cast %27 : vector<1x128xf32> to vector<1x1x128xf32>
    %29 = arith.extui %1 : i1 to i32
    %c0_i32_12 = arith.constant 0 : i32
    %30 = arith.cmpi ne, %29, %c0_i32_12 : i32
    scf.if %30 {
      %36 = math.sqrt %28 : vector<1x1x128xf32>
      %37 = tpu.iota {dimensions = array<i32: 2>} : vector<1x1x128xi32>
      %c128_i32 = arith.constant 128 : i32
      %38 = arith.muli %arg2, %c128_i32 : i32
      %39 = vector.broadcast %38 : i32 to vector<1x1x128xi32>
      %40 = arith.addi %37, %39 : vector<1x1x128xi32>
      %c8_i32 = arith.constant 8 : i32
      %41 = vector.broadcast %c8_i32 : i32 to vector<1x1x128xi32>
      %42 = arith.cmpi slt, %40, %41 : vector<1x1x128xi32>
      %cst_15 = arith.constant 0.000000e+00 : f32
      %43 = vector.broadcast %cst_15 : f32 to vector<1x1x128xf32>
      %44 = arith.select %42, %36, %43 : vector<1x1x128xi1>, vector<1x1x128xf32>
      %c0_16 = arith.constant 0 : index
      %c0_17 = arith.constant 0 : index
      %45 = vector.load %arg9[%c0_16, %c0_17] : memref<1x1xf32, #tpu.memory_space<vmem>>, vector<1x1xf32>
      %cst_18 = arith.constant dense<0.000000e+00> : vector<1x1xf32>
      %46 = vector.multi_reduction <add>, %44, %cst_18 [2] : vector<1x1x128xf32> to vector<1x1xf32>
      %47 = arith.addf %45, %46 : vector<1x1xf32>
      %c0_19 = arith.constant 0 : index
      %c0_20 = arith.constant 0 : index
      %48 = vector.load %arg9[%c0_19, %c0_20] : memref<1x1xf32, #tpu.memory_space<vmem>>, vector<1x1xf32>
      tpu.vector_store %arg9[%c0_19, %c0_20], %47 {strides = array<i32>} : memref<1x1xf32, #tpu.memory_space<vmem>>, vector<1x1xf32>,
    } else {
    }
    %31 = arith.extui %3 : i1 to i32
    %c0_i32_13 = arith.constant 0 : i32
    %32 = arith.cmpi ne, %31, %c0_i32_13 : i32
    scf.if %32 {
      %c0_15 = arith.constant 0 : index
      %c0_16 = arith.constant 0 : index
      %c0_17 = arith.constant 0 : index
      %36 = vector.load %arg6[%c0_15, %c0_16, %c0_17] : memref<1x16x128xf32, #tpu.memory_space<vmem>>, vector<1x16x128xf32>
      %cst_18 = arith.constant dense<0x7F800000> : vector<1x16xf32>
      %37 = vector.multi_reduction <minimumf>, %36, %cst_18 [2] : vector<1x16x128xf32> to vector<1x16xf32>
      %38 = vector.shape_cast %37 : vector<1x16xf32> to vector<1x16x1xf32>
      %39 = math.sqrt %38 : vector<1x16x1xf32>
      %c0_19 = arith.constant 0 : index
      %c0_20 = arith.constant 0 : index
      %40 = vector.load %arg8[%c0_19, %c0_20] : memref<1x1xf32, #tpu.memory_space<vmem>>, vector<1x1xf32>
      %cst_21 = arith.constant dense<0.000000e+00> : vector<1x1xf32>
      %41 = vector.multi_reduction <add>, %39, %cst_21 [1] : vector<1x16x1xf32> to vector<1x1xf32>
      %42 = arith.addf %40, %41 : vector<1x1xf32>
      %c0_22 = arith.constant 0 : index
      %c0_23 = arith.constant 0 : index
      %43 = vector.load %arg8[%c0_22, %c0_23] : memref<1x1xf32, #tpu.memory_space<vmem>>, vector<1x1xf32>
      tpu.vector_store %arg8[%c0_22, %c0_23], %42 {strides = array<i32>} : memref<1x1xf32, #tpu.memory_space<vmem>>, vector<1x1xf32>,
    } else {
    }
    %33 = arith.andi %1, %3 : i1
    %34 = arith.extui %33 : i1 to i32
    %c0_i32_14 = arith.constant 0 : i32
    %35 = arith.cmpi ne, %34, %c0_i32_14 : i32
    scf.if %35 {
      %c0_15 = arith.constant 0 : index
      %c0_16 = arith.constant 0 : index
      %36 = vector.load %arg8[%c0_15, %c0_16] : memref<1x1xf32, #tpu.memory_space<vmem>>, vector<1x1xf32>
      %cst_17 = arith.constant 6.250000e-02 : f32
      %37 = vector.broadcast %cst_17 : f32 to vector<1x1xf32>
      %38 = arith.mulf %36, %37 : vector<1x1xf32>
      %c0_18 = arith.constant 0 : index
      %c0_19 = arith.constant 0 : index
      %39 = vector.load %arg9[%c0_18, %c0_19] : memref<1x1xf32, #tpu.memory_space<vmem>>, vector<1x1xf32>
      %cst_20 = arith.constant 1.250000e-01 : f32
      %40 = vector.broadcast %cst_20 : f32 to vector<1x1xf32>
      %41 = arith.mulf %39, %40 : vector<1x1xf32>
      %42 = arith.addf %38, %41 : vector<1x1xf32>
      %cst_21 = arith.constant 5.000000e-01 : f32
      %43 = vector.broadcast %cst_21 : f32 to vector<1x1xf32>
      %44 = arith.mulf %43, %42 : vector<1x1xf32>
      %45 = vector.shape_cast %44 : vector<1x1xf32> to vector<1x1xf32>
      %46 = vector.broadcast %45 : vector<1x1xf32> to vector<1x128xf32>
      %c0_22 = arith.constant 0 : index
      %c0_23 = arith.constant 0 : index
      %c0_24 = arith.constant 0 : index
      %47 = vector.load %arg5[%c0_22, %c0_23, %c0_24] : memref<1x1x128xf32, #tpu.memory_space<vmem>>, vector<1x1x128xf32>
      %48 = vector.shape_cast %47 : vector<1x1x128xf32> to vector<1x128xf32>
      %49 = vector.shape_cast %46 : vector<1x128xf32> to vector<1x1x128xf32>
      tpu.vector_store %arg5[%c0_22, %c0_23, %c0_24], %49 {strides = array<i32>} : memref<1x1x128xf32, #tpu.memory_space<vmem>>, vector<1x1x128xf32>,
    } else {
    }
    return
  }
  func.func @transform_0(%arg0: i32, %arg1: i32, %arg2: i32) -> (i32, i32, i32) {
    %c0_i32 = arith.constant 0 : i32
    %c0_i32_0 = arith.constant 0 : i32
    return %arg0, %arg1, %c0_i32 : i32, i32, i32
  }
  func.func @transform_1(%arg0: i32, %arg1: i32, %arg2: i32) -> (i32, i32, i32) {
    %c0_i32 = arith.constant 0 : i32
    %c0_i32_0 = arith.constant 0 : i32
    return %arg0, %c0_i32, %arg2 : i32, i32, i32
  }
  func.func @transform_2(%arg0: i32, %arg1: i32, %arg2: i32) -> (i32, i32, i32) {
    %c0_i32 = arith.constant 0 : i32
    %c0_i32_0 = arith.constant 0 : i32
    %c0_i32_1 = arith.constant 0 : i32
    return %arg0, %c0_i32, %c0_i32_0 : i32, i32, i32
  }
}

</mosaic_0001>

<llo_original>
// kernel: tpu_custom_call.1
$region0: #{tpu_custom_call.1}
  #allocation0 [shape = 'u32[]', space=smem, size = 0x4, offset = 0x4, fixed_abs, tag = 'smem constant byte address 0x4 - core index']
  #allocation1 [shape = 'u32[144,128]{1,0:T(1,128)}', space=vmem, size = 0x12000, scoped, tag = 'internal scratch']
  #allocation2 [shape = 'f32[1,16,128]{2,1,0:T(8,128)}', space=vmem, size = 0x2000, scoped, tag = 'scratch operand']
  #allocation3 [shape = 'f32[1,1,1,128]{3,2,1,0:T(1,128)}', space=vmem, size = 0x200, scoped, tag = 'scratch operand']
  #allocation4 [shape = 'f32[1,1]{1,0:T(1,128)}', space=vmem, size = 0x200, scoped, tag = 'scratch operand']
  #allocation5 [shape = 'f32[1,1]{1,0:T(1,128)}', space=vmem, size = 0x200, scoped, tag = 'scratch operand']
  %s0 = inlined_call_operand.vmem [shape: f32[2,16,2], index: 0, kind: input, shape index: {}]
  %s1 = inlined_call_operand.vmem [shape: f32[2,2,128], index: 1, kind: input, shape index: {}]
  %s2 = inlined_call_operand.hbm [shape: f32[2,1,128], index: 2, kind: output, shape index: {}]
  %s3 = sld [smem:[#allocation0]]
  $region65: #{tpu_custom_call.1} parent=0
    _
  %s5 = ssub.s32 1, %s3
  %s6 = scalar_select 0, %s5, %s3
  $region1: #{tpu_custom_call.1} parent=0
    #allocation6 [shape = 'u8[1024]{0}', space=vmem, size = 0x400, scoped, tag = 'output window, operand 0']
    #allocation7 [shape = 's32[2]{0}', space=sflag, size = 0x8, scoped, tag = 'scoped memory for tpu_custom_call.1']
    %7 = vsyncpa [#allocation7], 0
    %s8 = scalar_lea.sflag [#allocation7], 1
    %9 = vsyncpa %s8, 0
    loop: start=0, step=1, limit=4
    $region2: #{tpu_custom_call.1} parent=1 // loop_pre_header
      _
    $region3: #{tpu_custom_call.1} parent=1 // loop_header
      %s11 = sphi 0, %s15
      %p12 = scmp.ge.s32.totalorder %s11, 4
      %s18 = sphi 0, %s37
      %s19 = sphi 0, %s33
      %s20 = sphi 0, %s29
      %s21 = sphi 0, %s18
      %s22 = sphi 0, %s19
      %s23 = sphi 0, %s20
      %s24 = sphi 0, %s21
      %s25 = sphi 0, %s22
      %s26 = sphi 0, %s23
      %s42 = sphi 0, %s44
      %s45 = sphi 0, %s42
      %s46 = sphi 0, %s45
      %s62 = sphi 0, %s46
      %s70 = sphi 0, %s72
      %s73 = sphi 0, %s70
      %s74 = sphi 0, %s73
      %s90 = sphi 0, %s74
      %s96 = sphi 0, %s98
      %s99 = sphi 0, %s96
      %s100 = sphi 0, %s99
      %s116 = sphi 0, %s100
    $region4: #{tpu_custom_call.1} parent=1 // loop_header_branch
      %14 = sbr.rel (%p12) target = $region8
    $region5: #{tpu_custom_call.1} parent=1 // loop_body
      %s16 = ssub.s32 %s11, 1
      %s17 = ssub.s32 %s11, 2
      %s27 = sadd.s32 1, %s20
      %p28 = scmp.ge.s32.totalorder %s27, 1
      %s29 = scalar_select %p28, 0, %s27
      %s30 = sadd.s32 1, %s19
      %s31 = scalar_select %p28, %s30, %s19
      %p32 = scmp.ge.s32.totalorder %s31, 1
      %s33 = scalar_select %p32, 0, %s31
      %s34 = sadd.s32 1, %s18
      %s35 = scalar_select %p32, %s34, %s18
      %p36 = scmp.ge.s32.totalorder %s35, 2
      %s37 = scalar_select %p36, 0, %s35
      %s38 = ssub.s32 %s18, %s37
      %s39 = ssub.s32 %s19, %s33
      %s40 = sor.u32 %s38, %s39
      %p41 = scmp.eq.s32.totalorder %s40, 0
      %s43 = sadd.s32 %s42, 1
      %s44 = scalar_select %p41, %s42, %s43
      %p47 = pneg %p41
      %p48 = scmp.eq.s32.totalorder %s11, 1
      %p49 = por %p47, %p48
      %p50 = scmp.ne.s32.totalorder %s42, %s45
      %p51 = scmp.eq.s32.totalorder %s11, 0
      %p52 = por %p50, %p51
      %p53 = scmp.ne.s32.totalorder %s42, %s45
      %p54 = scmp.eq.s32.totalorder %s16, 1
      %p55 = por %p53, %p54
      %p56 = scmp.ne.s32.totalorder %s45, %s46
      %p57 = scmp.eq.s32.totalorder %s16, 0
      %p58 = por %p56, %p57
      %p59 = scmp.ne.s32.totalorder %s45, %s46
      %p60 = scmp.eq.s32.totalorder %s17, 1
      %p61 = por %p59, %p60
      %p63 = scmp.ne.s32.totalorder %s46, %s62
      %p64 = scmp.eq.s32.totalorder %s17, 0
      %p65 = por %p63, %p64
      %s66 = ssub.s32 %s18, %s37
      %s67 = ssub.s32 %s20, %s29
      %s68 = sor.u32 %s66, %s67
      %p69 = scmp.eq.s32.totalorder %s68, 0
      %s71 = sadd.s32 %s70, 1
      %s72 = scalar_select %p69, %s70, %s71
      %p75 = pneg %p69
      %p76 = scmp.eq.s32.totalorder %s11, 1
      %p77 = por %p75, %p76
      %p78 = scmp.ne.s32.totalorder %s70, %s73
      %p79 = scmp.eq.s32.totalorder %s11, 0
      %p80 = por %p78, %p79
      %p81 = scmp.ne.s32.totalorder %s70, %s73
      %p82 = scmp.eq.s32.totalorder %s16, 1
      %p83 = por %p81, %p82
      %p84 = scmp.ne.s32.totalorder %s73, %s74
      %p85 = scmp.eq.s32.totalorder %s16, 0
      %p86 = por %p84, %p85
      %p87 = scmp.ne.s32.totalorder %s73, %s74
      %p88 = scmp.eq.s32.totalorder %s17, 1
      %p89 = por %p87, %p88
      %p91 = scmp.ne.s32.totalorder %s74, %s90
      %p92 = scmp.eq.s32.totalorder %s17, 0
      %p93 = por %p91, %p92
      %s94 = ssub.s32 %s18, %s37
      %p95 = scmp.eq.s32.totalorder %s94, 0
      %s97 = sadd.s32 %s96, 1
      %s98 = scalar_select %p95, %s96, %s97
      %p101 = pneg %p95
      %p102 = scmp.eq.s32.totalorder %s11, 1
      %p103 = por %p101, %p102
      %p104 = scmp.ne.s32.totalorder %s96, %s99
      %p105 = scmp.eq.s32.totalorder %s11, 0
      %p106 = por %p104, %p105
      %p107 = scmp.ne.s32.totalorder %s96, %s99
      %p108 = scmp.eq.s32.totalorder %s16, 1
      %p109 = por %p107, %p108
      %p110 = scmp.ne.s32.totalorder %s99, %s100
      %p111 = scmp.eq.s32.totalorder %s16, 0
      %p112 = por %p110, %p111
      %p113 = scmp.ne.s32.totalorder %s99, %s100
      %p114 = scmp.eq.s32.totalorder %s17, 1
      %p115 = por %p113, %p114
      %p117 = scmp.ne.s32.totalorder %s100, %s116
      %p118 = scmp.eq.s32.totalorder %s17, 0
      %p119 = por %p117, %p118
      %p120 = scmp.le.s32.totalorder 1, %s11
      %p121 = scmp.lt.s32.totalorder %s11, 3
      %p122 = pnand %p120, %p121
      %p123 = pneg %p122
      // Predicated region
      $region9: #{tpu_custom_call.1} parent=5 // pred_check
        _
      $region10: #{tpu_custom_call.1} parent=5 // pred_check_branch
        %125 = sbr.rel (%p122) target = $region12
      $region11: #{tpu_custom_call.1} parent=5 // pred_region
        %s126 = ssub.s32 %s11, 1
      $region12: #{tpu_custom_call.1} parent=5 // pred_fallthru
        _
      %p127 = scmp.lt.s32.totalorder %s11, 2
      // Predicated region
      $region13: #{tpu_custom_call.1} parent=5 // pred_check
        %p128 = pneg %p127
      $region14: #{tpu_custom_call.1} parent=5 // pred_check_branch
        %130 = sbr.rel (%p128) target = $region16
      $region15: #{tpu_custom_call.1} parent=5 // pred_region
        // Predicated region
        $region17: #{tpu_custom_call.1} parent=15 // pred_check
          %p131 = pneg %p52
        $region18: #{tpu_custom_call.1} parent=15 // pred_check_branch
          %133 = sbr.rel (%p131) target = $region20
        $region19: #{tpu_custom_call.1} parent=15 // pred_region
          %s134 = smul.u32 2, %s19
          %p135 = scmp.lt.s32.totalorder %s18, 1
          %s136 = scalar_select %p135, %s18, 1
          %p137 = scmp.lt.s32.totalorder %s134, 1
          %s138 = scalar_select %p137, %s134, 1
          %s139 = smul.addr %s136, 2
          %s140 = sadd.s32 %s138, %s139
          %s141 = smul.addr %s140, 8
          %s142 = scalar_lea.vmem %s0, %s141
          %s143 = smul.u32 2, %s19
        $region20: #{tpu_custom_call.1} parent=15 // pred_fallthru
          _
        // Predicated region
        $region21: #{tpu_custom_call.1} parent=15 // pred_check
          %p144 = pneg %p80
        $region22: #{tpu_custom_call.1} parent=15 // pred_check_branch
          %146 = sbr.rel (%p144) target = $region24
        $region23: #{tpu_custom_call.1} parent=15 // pred_region
          %p147 = scmp.lt.s32.totalorder %s18, 1
          %s148 = scalar_select %p147, %s18, 1
          %p149 = scmp.lt.s32.totalorder %s20, 0
          %s150 = scalar_select %p149, %s20, 0
          %s151 = sadd.s32 %s150, %s148
          %s152 = smul.addr %s151, 2
          %s153 = scalar_lea.vmem %s1, %s152
        $region24: #{tpu_custom_call.1} parent=15 // pred_fallthru
          _
      $region16: #{tpu_custom_call.1} parent=5 // pred_fallthru
        _
      %p154 = scmp.le.s32.totalorder 1, %s11
      %p155 = scmp.lt.s32.totalorder %s11, 3
      %p156 = pnand %p154, %p155
      %p157 = pneg %p156
      // Predicated region
      $region25: #{tpu_custom_call.1} parent=5 // pred_check
        _
      $region26: #{tpu_custom_call.1} parent=5 // pred_check_branch
        %159 = sbr.rel (%p156) target = $region28
      $region27: #{tpu_custom_call.1} parent=5 // pred_region
        %s160 = ssub.s32 %s11, 1
        %s161 = smul.u32 2, %s22
        %p162 = scmp.lt.s32.totalorder %s21, 1
        %s163 = scalar_select %p162, %s21, 1
        %p164 = scmp.lt.s32.totalorder %s161, 1
        %s165 = scalar_select %p164, %s161, 1
        %s166 = smul.addr %s163, 2
        %s167 = sadd.s32 %s165, %s166
        %s168 = smul.addr %s167, 8
        %s169 = scalar_lea.vmem %s0, %s168
        %p170 = pneg %p58
        %p171 = pneg %p55
        %p172 = scmp.lt.s32.totalorder %s21, 1
        %s173 = scalar_select %p172, %s21, 1
        %p174 = scmp.lt.s32.totalorder %s23, 0
        %s175 = scalar_select %p174, %s23, 0
        %s176 = sadd.s32 %s175, %s173
        %s177 = smul.addr %s176, 2
        %s178 = scalar_lea.vmem %s1, %s177
        %p179 = pneg %p86
        %p180 = pneg %p83
        %p181 = pneg %p112
        %p182 = pneg %p109
        %s183 = sand.u32 %s99, 1
        %s184 = scalar_lea.sflag [#allocation7], %s183
        %s185 = sand.u32 %s99, 1
        %s186 = scalar_lea.vmem [#allocation6], %s185
        %s187 = smul.u32 2, %s22
        %p188 = scmp.lt.s32.totalorder %s21, 1
        %s189 = scalar_select %p188, %s21, 1
        %p190 = scmp.lt.s32.totalorder %s187, 1
        %s191 = scalar_select %p190, %s187, 1
        %s192 = smul.addr %s189, 2
        %s193 = sadd.s32 %s191, %s192
        %s194 = smul.addr %s193, 8
        %s195 = scalar_lea.vmem %s0, %s194
        %s196 = smul.u32 2, %s22
        %p197 = scmp.lt.s32.totalorder %s21, 1
        %s198 = scalar_select %p197, %s21, 1
        %p199 = scmp.lt.s32.totalorder %s23, 0
        %s200 = scalar_select %p199, %s23, 0
        %s201 = sadd.s32 %s200, %s198
        %s202 = smul.addr %s201, 2
        %s203 = scalar_lea.vmem %s1, %s202
        %p204 = scmp.eq.s32.totalorder %s22, 0
        %p205 = scmp.eq.s32.totalorder %s23, 0
        %p206 = pnand %p204, %p205
        %p207 = pneg %p206
        // Predicated region
        $region29: #{tpu_custom_call.1} parent=27 // pred_check
          _
        $region30: #{tpu_custom_call.1} parent=27 // pred_check_branch
          %209 = sbr.rel (%p206) target = $region32
        $region31: #{tpu_custom_call.1} parent=27 // pred_region
          %vm210 = vcmask 0
          %211 = vst.msk [vmem:[#allocation4] sm:$0x1] %vm210, 0.0
          %212 = vst.msk [vmem:[#allocation5] sm:$0x1] %vm210, 0.0
        $region32: #{tpu_custom_call.1} parent=27 // pred_fallthru
          _
        %v213 = vld [vmem:[%s195] sm:$0xff]
        %v214 = vld [vmem:[%s195 + $0x8] sm:$0xff]
        %v215 = vld [vmem:[%s203] sm:$0x3]
        %217 = vset.pattern.permute.xlu0 0
        %218 = vperm.xlu0 %217, %v213
        %v219 = vpop.permute.xlu0 %218
        %222 = vset.pattern.permute.xlu0 0
        %223 = vperm.xlu0 %222, %v214
        %v224 = vpop.permute.xlu0 %223
        %v226 = vlaneseq
        %v227 = vshrl.u32 %v226, 7
        %v228 = vsub.s32 0, %v227
        %v229 = vrot.slane %v215, %v228
        %v230 = vsub.f32 %v219, %v229
        %v231 = vsub.f32 %v224, %v229
        %232 = vset.pattern.permute.xlu0 1
        %233 = vperm.xlu0 %232, %v213
        %v234 = vpop.permute.xlu0 %233
        %236 = vset.pattern.permute.xlu0 1
        %237 = vperm.xlu0 %236, %v214
        %v238 = vpop.permute.xlu0 %237
        %v240 = vlaneseq
        %v241 = vshrl.u32 %v240, 7
        %v242 = vsub.s32 1, %v241
        %v243 = vrot.slane %v215, %v242
        %v244 = vsub.f32 %v234, %v243
        %v245 = vsub.f32 %v238, %v243
        %v246 = vmul.f32 %v230, %v230
        %v247 = vmul.f32 %v231, %v231
        %v248 = vmul.f32 %v244, %v244
        %v249 = vmul.f32 %v245, %v245
        %v250 = vadd.f32 %v246, %v248
        %v251 = vadd.f32 %v247, %v249
        // Predicated region
        $region33: #{tpu_custom_call.1} parent=27 // pred_check
          %p252 = pneg %p205
        $region34: #{tpu_custom_call.1} parent=27 // pred_check_branch
          %254 = sbr.rel (%p252) target = $region36
        $region35: #{tpu_custom_call.1} parent=27 // pred_region
          %255 = vst [vmem:[#allocation2] sm:$0xff] %v250
          %256 = vst [vmem:[#allocation2 + $0x8] sm:$0xff] %v251
        $region36: #{tpu_custom_call.1} parent=27 // pred_fallthru
          _
        %p257 = scmp.gt.s32.totalorder %s23, 0
        // Predicated region
        $region37: #{tpu_custom_call.1} parent=27 // pred_check
          %p258 = pneg %p257
        $region38: #{tpu_custom_call.1} parent=27 // pred_check_branch
          %260 = sbr.rel (%p258) target = $region40
        $region39: #{tpu_custom_call.1} parent=27 // pred_region
          %v261 = vld [vmem:[#allocation2] sm:$0xff]
          %v262 = vld [vmem:[#allocation2 + $0x8] sm:$0xff]
          %v263 = vmin.f32 %v261, %v250
          %v264 = vmin.f32 %v262, %v251
          %265 = vst [vmem:[#allocation2] sm:$0xff] %v263
          %266 = vst [vmem:[#allocation2 + $0x8] sm:$0xff] %v264
        $region40: #{tpu_custom_call.1} parent=27 // pred_fallthru
          _
        %v267 = vmin.f32 %v250, %v251
        %v268 = vrot.slane %v267, 4
        %v269 = vmin.f32 %v267, %v268
        %v270 = vrot.slane %v269, 2
        %v271 = vmin.f32 %v269, %v270
        %v272 = vrot.slane %v271, 1
        %v273 = vmin.f32 %v271, %v272
        // Predicated region
        $region41: #{tpu_custom_call.1} parent=27 // pred_check
          %p274 = pneg %p204
        $region42: #{tpu_custom_call.1} parent=27 // pred_check_branch
          %276 = sbr.rel (%p274) target = $region44
        $region43: #{tpu_custom_call.1} parent=27 // pred_region
          %v277 = vrsqrt.pop %v273
          %v278 = vmul.f32 %v273, %v277
          %vm279 = vcmp.eq.f32.partialorder %v273, inf
          %v280 = vsel %vm279, %v273, %v278
          %vm281 = vcmp.eq.f32.partialorder %v273, 0.0
          %v282 = vand.u32 %v273, 2147483648
          %v283 = vsel %vm281, %v282, %v280
          %v284 = vlaneseq
          %v285 = vand.u32 %v284, 127
          %s286 = smul.u32 %s23, 128
          %v287 = vstv %s286
          %v288 = vadd.s32 %v285, %v287
          %vm289 = vcmp.lt.s32.totalorder %v288, 8
          %v290 = vsel %vm289, %v283, 0.0
          %v291 = vld [vmem:[#allocation5] sm:$0x1]
          %292 = vadd.xlane.f32.xlu0 %v290
          %v293 = vpop.xlane.xlu0 %292
          %v294 = vadd.f32 %v291, %v293
          %vm295 = vcmask 0
          %296 = vst.msk [vmem:[#allocation5] sm:$0x1] %vm295, %v294
        $region44: #{tpu_custom_call.1} parent=27 // pred_fallthru
          _
        // Predicated region
        $region45: #{tpu_custom_call.1} parent=27 // pred_check
          %p297 = pneg %p205
        $region46: #{tpu_custom_call.1} parent=27 // pred_check_branch
          %299 = sbr.rel (%p297) target = $region48
        $region47: #{tpu_custom_call.1} parent=27 // pred_region
          %v300 = vld [vmem:[#allocation2] sm:$0xff]
          %v301 = vld [vmem:[#allocation2 + $0x8] sm:$0xff]
          %302 = vmin.xlane.f32.xlu0 %v300
          %v303 = vpop.xlane.xlu0 %302
          %304 = vmin.xlane.f32.xlu0 %v301
          %v305 = vpop.xlane.xlu0 %304
          %v306 = vrsqrt.pop %v303
          %v307 = vmul.f32 %v303, %v306
          %vm308 = vcmp.eq.f32.partialorder %v303, inf
          %v309 = vsel %vm308, %v303, %v307
          %vm310 = vcmp.eq.f32.partialorder %v303, 0.0
          %v311 = vand.u32 %v303, 2147483648
          %v312 = vsel %vm310, %v311, %v309
          %v313 = vrsqrt.pop %v305
          %v314 = vmul.f32 %v305, %v313
          %vm315 = vcmp.eq.f32.partialorder %v305, inf
          %v316 = vsel %vm315, %v305, %v314
          %vm317 = vcmp.eq.f32.partialorder %v305, 0.0
          %v318 = vand.u32 %v305, 2147483648
          %v319 = vsel %vm317, %v318, %v316
          %v320 = vld [vmem:[#allocation4] sm:$0x1]
          %v321 = vadd.f32 %v312, %v319
          %v322 = vrot.slane %v321, 4
          %v323 = vadd.f32 %v321, %v322
          %v324 = vrot.slane %v323, 2
          %v325 = vadd.f32 %v323, %v324
          %v326 = vrot.slane %v325, 1
          %v327 = vadd.f32 %v325, %v326
          %v328 = vadd.f32 %v320, %v327
          %vm329 = vcmask 0
          %330 = vst.msk [vmem:[#allocation4] sm:$0x1] %vm329, %v328
        $region48: #{tpu_custom_call.1} parent=27 // pred_fallthru
          _
        // Predicated region
        $region49: #{tpu_custom_call.1} parent=27 // pred_check
          _
        $region50: #{tpu_custom_call.1} parent=27 // pred_check_branch
          %332 = sbr.rel (%p206) target = $region52
        $region51: #{tpu_custom_call.1} parent=27 // pred_region
          %v333 = vld [vmem:[#allocation4] sm:$0x1]
          %v334 = vmul.f32 %v333, 0.0625
          %v335 = vld [vmem:[#allocation5] sm:$0x1]
          %v336 = vmul.f32 %v335, 0.125
          %v337 = vadd.f32 %v334, %v336
          %v338 = vmul.f32 %v337, 0.5
          %340 = vset.pattern.permute.xlu0 0
          %341 = vperm.xlu0 %340, %v338
          %v342 = vpop.permute.xlu0 %341
          %v344 = vlaneseq
          %v345 = vshrl.u32 %v344, 7
          %v346 = vsub.s32 0, %v345
          %v347 = vrot.slane %v342, %v346
          %348 = vst [vmem:[%s186] sm:$0x1] %v347
        $region52: #{tpu_custom_call.1} parent=27 // pred_fallthru
          _
        %s349 = sand.u32 %s99, 1
        %s350 = scalar_lea.sflag [#allocation7], %s349
        %s351 = sand.u32 %s99, 1
        %s352 = scalar_lea.vmem [#allocation6], %s351
        // Predicated region
        $region53: #{tpu_custom_call.1} parent=27 // pred_check
          %p353 = pneg %p109
        $region54: #{tpu_custom_call.1} parent=27 // pred_check_branch
          %355 = sbr.rel (%p353) target = $region56
        $region55: #{tpu_custom_call.1} parent=27 // pred_region
          %s357 = ssub.s32 16, 16
          %358 = vsyncadd %s350, %s357
          %s359 = smul.addr %s21, 16
          %s360 = scalar_lea.hbm %s2, %s359
          %s362 = sshll.u32 %s352, 4
          %s363 = int_to_ptr.vmem [resolvable:$true] %s362
          %365 = dma.vmem_to_hbm [thread:$0]  %s363, 16, %s360, %s350
        $region56: #{tpu_custom_call.1} parent=27 // pred_fallthru
          _
      $region28: #{tpu_custom_call.1} parent=5 // pred_fallthru
        _
      %p366 = scmp.le.s32.totalorder 2, %s11
      // Predicated region
      $region57: #{tpu_custom_call.1} parent=5 // pred_check
        %p367 = pneg %p366
      $region58: #{tpu_custom_call.1} parent=5 // pred_check_branch
        %369 = sbr.rel (%p367) target = $region60
      $region59: #{tpu_custom_call.1} parent=5 // pred_region
        %s370 = ssub.s32 %s11, 2
        // Predicated region
        $region61: #{tpu_custom_call.1} parent=59 // pred_check
          %p371 = pneg %p115
        $region62: #{tpu_custom_call.1} parent=59 // pred_check_branch
          %373 = sbr.rel (%p371) target = $region64
        $region63: #{tpu_custom_call.1} parent=59 // pred_region
          %s374 = sand.u32 %s100, 1
          %s375 = scalar_lea.sflag [#allocation7], %s374
          %s376 = sand.u32 %s100, 1
          %s377 = scalar_lea.vmem [#allocation6], %s376
          %378 = dma.done %s375, 16
        $region64: #{tpu_custom_call.1} parent=59 // pred_fallthru
          _
      $region60: #{tpu_custom_call.1} parent=5 // pred_fallthru
        _
    $region6: #{tpu_custom_call.1} parent=1 // loop_footer
      %s15 = sadd.s32 1, %s11
    $region7: #{tpu_custom_call.1} parent=1 // loop_footer_branch
      %10 = sbr.rel target = $region3
    $region8: #{tpu_custom_call.1} parent=1 // loop_exit
      _
    %379 = vsyncpa [#allocation7], 1
    %s380 = scalar_lea.sflag [#allocation7], 1
    %381 = vsyncpa %s380, 1

</llo_original>
